<compile_context>
chip_gen: v5e
topology: v5e:2x2
jax: 0.10.0
libtpu: 0.0.40
codegen_flags: <defaults>
</compile_context>

<pallas_src>
import jax
import jax.numpy as jnp
from jax.experimental import pallas as pl
from jax.experimental.pallas import tpu as pltpu

NUM_COUPLING = 6


# --------------------------------------------------------------------------- #
# Kernel
# --------------------------------------------------------------------------- #
def aleatoric_fwd_kernel(x_ref, w1e_ref, w2e_ref, head_w_ref, pwb_ref, out_ref):
    """x = [h_hat | q_t | 1 | z1 | z2]; all biases are folded into the weights."""
    L = NUM_COUPLING
    x = x_ref[...]                                            # [tb, hist+4]

    # Conditioner: Linear -> ReLU -> Linear -> ReLU (biases folded).
    h1 = jnp.maximum(
        jnp.dot(x, w1e_ref[...], preferred_element_type=jnp.float32), 0.0)
    cond = jnp.maximum(
        jnp.dot(h1, w2e_ref[...], preferred_element_type=jnp.float32), 0.0)

    # All 6 coupling heads as one fused matmul: [tb, 1 + 2L]
    #   col 0       : sum_l scale_logit_l          (total)
    #   cols 1..L   : sum_{m>l} scale_logit_m      (exclusive suffix)
    #   cols L+1..  : shift_l
    heads = jnp.dot(cond, head_w_ref[...], preferred_element_type=jnp.float32)

    exp_part = jnp.exp(heads[:, :1 + L])                      # EUP
    total_scale = exp_part[:, 0:1]                            # prod_l exp(s_l)
    shift_acc = jnp.sum(heads[:, 1 + L:] * exp_part[:, 1:],
                        axis=-1, keepdims=True)               # sum_l t_l * prod_{m>l} exp(s_m)

    K = x.shape[-1]
    z1 = x[:, K - 2:K - 1].astype(jnp.float32)
    z2 = x[:, K - 1:K].astype(jnp.float32)
    z2_out = total_scale * z2 + shift_acc

    # Final Linear(2, 1); pw/pb read as SMEM scalars.
    out = z1 * pwb_ref[0] + z2_out * pwb_ref[1] + pwb_ref[2]
    out_ref[...] = out.astype(out_ref.dtype)


# --------------------------------------------------------------------------- #
# Parameter init (PyTorch nn.Linear layout) and kernel-layout packing
# --------------------------------------------------------------------------- #
def init_params(key, history_dim, hidden_dim, num_layers=NUM_COUPLING):
    """Raw parameters in PyTorch layout: weight [out, in], bias [out]."""
    def linear(k, out_f, in_f):
        kw, kb = jax.random.split(k)
        bound = 1.0 / jnp.sqrt(jnp.float32(in_f))
        w = jax.random.uniform(kw, (out_f, in_f), jnp.float32, -bound, bound)
        b = jax.random.uniform(kb, (out_f,), jnp.float32, -bound, bound)
        return w, b

    keys = jax.random.split(key, 3 + 2 * num_layers)
    w1, b1 = linear(keys[0], hidden_dim, history_dim + 1)     # conditioner layer 1
    w2, b2 = linear(keys[1], hidden_dim, hidden_dim)          # conditioner layer 2
    pw, pb = linear(keys[2], 1, 2)                            # projection Linear(2,1)

    sw, sb, hw, hb = [], [], [], []
    for l in range(num_layers):
        ws, bs = linear(keys[3 + 2 * l], 1, hidden_dim)       # scale_net of layer l
        wh, bh = linear(keys[4 + 2 * l], 1, hidden_dim)       # shift_net of layer l
        sw.append(ws[0]); sb.append(bs[0])
        hw.append(wh[0]); hb.append(bh[0])

    return dict(w1=w1, b1=b1, w2=w2, b2=b2,
                sw=jnp.stack(sw), sb=jnp.stack(sb),           # [L, H], [L]
                hw=jnp.stack(hw), hb=jnp.stack(hb),           # [L, H], [L]
                pw=pw, pb=pb)                                 # [1, 2], [1]


def pack_params(raw, history_dim, dtype=jnp.float32):
    """One-time repack: pre-transposed, biases folded, coupling heads fused."""
    L = NUM_COUPLING
    hist = history_dim
    H = raw["w2"].shape[0]
    K = hist + 4                                              # h_hat | q_t | 1 | z1 | z2

    # --- fused coupling heads (exclusive suffix sums of scale logits) ---
    sw, sb = raw["sw"], raw["sb"]
    hw, hb = raw["hw"], raw["hb"]
    incl_w = jnp.flip(jnp.cumsum(jnp.flip(sw, 0), 0), 0)      # inclusive suffix
    incl_b = jnp.flip(jnp.cumsum(jnp.flip(sb, 0), 0), 0)
    suf_w, suf_b = incl_w - sw, incl_b - sb                   # exclusive suffix
    tot_w = jnp.sum(sw, axis=0, keepdims=True)                # [1, H]
    tot_b = jnp.sum(sb, keepdims=True)                        # [1]
    head_w = jnp.concatenate([tot_w, suf_w, hw], axis=0).T    # [H, 1+2L]
    head_b = jnp.concatenate([tot_b, suf_b, hb])              # [1+2L]

    # --- extended first layer [K, H+1]: folds b1 via the ones column, zero rows for z ---
    w1, b1 = raw["w1"], raw["b1"]                             # [H, hist+1], [H]
    w1e = jnp.zeros((K, H + 1), jnp.float32)
    w1e = w1e.at[:hist, :H].set(w1[:, :hist].T)
    w1e = w1e.at[hist, :H].set(w1[:, hist])                   # q_t column
    w1e = w1e.at[hist + 1, :H].set(b1)                        # ones column -> bias
    w1e = w1e.at[hist + 1, H].set(1.0)                        # propagate the ones unit

    # --- extended second layer [H+1, H+1]: folds b2, keeps the ones unit alive ---
    w2e = jnp.zeros((H + 1, H + 1), jnp.float32)
    w2e = w2e.at[:H, :H].set(raw["w2"].T)
    w2e = w2e.at[H, :H].set(raw["b2"])
    w2e = w2e.at[H, H].set(1.0)

    # --- extended head matrix [H+1, 1+2L]: folds head biases ---
    head_we = jnp.zeros((H + 1, 1 + 2 * L), jnp.float32)
    head_we = head_we.at[:H, :].set(head_w)
    head_we = head_we.at[H, :].set(head_b)

    pwb = jnp.concatenate([raw["pw"].reshape(-1), raw["pb"].reshape(-1)])  # (3,) f32

    return dict(
        w1e=w1e.astype(dtype),
        w2e=w2e.astype(dtype),
        head_w=head_we.astype(dtype),
        pwb=pwb.astype(jnp.float32),                          # SMEM scalars stay f32
        history_dim=hist,
    )


# --------------------------------------------------------------------------- #
# Wrapper
# --------------------------------------------------------------------------- #
def _build_slab(z_al, h_hat, q_t, dtype):
    B = h_hat.shape[0]
    return jnp.concatenate(
        [h_hat.astype(dtype), q_t.astype(dtype),
         jnp.ones((B, 1), dtype), z_al.astype(dtype)], axis=-1)


def _forward_packed_jax(z_al, h_hat, q_t, packed):
    """Small-batch fallback: same fused math, plain XLA."""
    L = NUM_COUPLING
    x = _build_slab(z_al, h_hat, q_t, packed["w1e"].dtype)
    h1 = jnp.maximum(jnp.dot(x, packed["w1e"]), 0.0)
    cond = jnp.maximum(jnp.dot(h1, packed["w2e"]), 0.0)
    heads = jnp.dot(cond, packed["head_w"]).astype(jnp.float32)
    exp_part = jnp.exp(heads[:, :1 + L])
    z2_out = exp_part[:, 0:1] * z_al[:, 1:2].astype(jnp.float32) + jnp.sum(
        heads[:, 1 + L:] * exp_part[:, 1:], axis=-1, keepdims=True)
    pwb = packed["pwb"]
    return z_al[:, 0:1].astype(jnp.float32) * pwb[0] + z2_out * pwb[1] + pwb[2]


def _pick_batch_tile(B, max_tile):
    """Big tiles to amortize per-step overhead; >=2 steps (megacore) when tiling."""
    if B <= max_tile:
        return B
    nb = max(2, pl.cdiv(B, max_tile))
    tb = -(-B // nb)                      # ceil
    tb = ((tb + 7) // 8) * 8              # sublane multiple
    return min(tb, B)


def aleatoric_forward(z_al, h_hat, q_t, packed, *,
                      max_batch_tile=4096, min_pallas_batch=0):
    """B(z_al, q_t, phi) forward. Output [B, 1] float32."""
    B = h_hat.shape[0]
    if B < min_pallas_batch:              # production: set ~4096; pallas launch not worth it
        return _forward_packed_jax(z_al, h_hat, q_t, packed)

    dtype = packed["w1e"].dtype
    x = _build_slab(z_al, h_hat, q_t, dtype)                  # [B, hist+4]
    K = x.shape[1]

    tb = _pick_batch_tile(B, max_batch_tile)
    nb = pl.cdiv(B, tb)

    def full_spec(arr):                                        # resident whole-array weights
        nd = arr.ndim
        return pl.BlockSpec(arr.shape, lambda i, nd=nd: (0,) * nd)

    in_specs = [
        pl.BlockSpec((tb, K), lambda i: (i, 0)),               # activation slab (batch-tiled)
        full_spec(packed["w1e"]),
        full_spec(packed["w2e"]),
        full_spec(packed["head_w"]),
        pl.BlockSpec(memory_space=pltpu.MemorySpace.SMEM),     # pw0, pw1, pb
    ]
    out_spec = pl.BlockSpec((tb, 1), lambda i: (i, 0))

    return pl.pallas_call(
        aleatoric_fwd_kernel,
        out_shape=jax.ShapeDtypeStruct((B, 1), jnp.float32),
        grid_spec=pltpu.PrefetchScalarGridSpec(
            num_scalar_prefetch=0,
            grid=(nb,),
            in_specs=in_specs,
            out_specs=out_spec),
        compiler_params=pltpu.CompilerParams(
            dimension_semantics=("parallel",),
            vmem_limit_bytes=32 * 1024 * 1024),
    )(x, packed["w1e"], packed["w2e"], packed["head_w"], packed["pwb"])


# --------------------------------------------------------------------------- #
# Pure-JAX reference mirroring the PyTorch forward (raw/unfused params)
# --------------------------------------------------------------------------- #
def aleatoric_forward_ref(z_al, h_hat, q_t, raw):
    xin = jnp.concatenate([h_hat, q_t], axis=-1)
    h1 = jnp.maximum(xin @ raw["w1"].T + raw["b1"], 0.0)
    cond = jnp.maximum(h1 @ raw["w2"].T + raw["b2"], 0.0)
    z1, z2 = z_al[:, 0:1], z_al[:, 1:2]
    for l in range(NUM_COUPLING):
        scale = jnp.exp(cond @ raw["sw"][l][:, None] + raw["sb"][l])
        shift = cond @ raw["hw"][l][:, None] + raw["hb"][l]
        z2 = scale * z2 + shift
    return jnp.concatenate([z1, z2], axis=-1) @ raw["pw"].T + raw["pb"]


if __name__ == "__main__":
    history_dim, hidden_dim = 8, 32
    key = jax.random.PRNGKey(0)
    k_p, k_z, k_h, k_q = jax.random.split(key, 4)
    raw = init_params(k_p, history_dim, hidden_dim)
    packed = pack_params(raw, history_dim)                    # f32 demo (bf16 optional)

    # ---- test 1: small batch, single grid step ----
    B = 8
    z_al = jax.random.normal(k_z, (B, 2), jnp.float32) * 0.1   # sample_base
    h_hat = jax.random.normal(k_h, (B, history_dim), jnp.float32)
    q_t = jax.random.normal(k_q, (B, 1), jnp.float32)

    out = aleatoric_forward(z_al, h_hat, q_t, packed)
    jax.block_until_ready(out)
    ref = aleatoric_forward_ref(z_al, h_hat, q_t, raw)
    assert out.shape == (B, 1)
    assert jnp.allclose(out, ref, atol=5e-4, rtol=5e-4), \
        float(jnp.max(jnp.abs(out - ref)))

    # ---- test 2: multi-step grid with a ragged last tile ----
    B2 = 300
    kz2, kh2, kq2 = jax.random.split(jax.random.PRNGKey(1), 3)
    z2_in = jax.random.normal(kz2, (B2, 2), jnp.float32) * 0.1
    h2 = jax.random.normal(kh2, (B2, history_dim), jnp.float32)
    q2 = jax.random.normal(kq2, (B2, 1), jnp.float32)
    out2 = aleatoric_forward(z2_in, h2, q2, packed, max_batch_tile=128)
    jax.block_until_ready(out2)
    ref2 = aleatoric_forward_ref(z2_in, h2, q2, raw)
    assert out2.shape == (B2, 1)
    assert jnp.allclose(out2, ref2, atol=5e-4, rtol=5e-4), \
        float(jnp.max(jnp.abs(out2 - ref2)))

    print("KERNEL_OK")
</pallas_src>

<mosaic_0001>
module attributes {stable_mosaic.version = 11 : i64} {
  func.func @aleatoric_fwd_kernel(%arg0: i32, %arg1: memref<8x12xf32, #tpu.memory_space<vmem>>, %arg2: memref<12x33xf32, #tpu.memory_space<vmem>>, %arg3: memref<33x33xf32, #tpu.memory_space<vmem>>, %arg4: memref<33x13xf32, #tpu.memory_space<vmem>>, %arg5: memref<3xf32, #tpu.memory_space<smem>>, %arg6: memref<8x1xf32, #tpu.memory_space<vmem>>) attributes {dimension_semantics = [#tpu.dimension_semantics<parallel>], iteration_bounds = array<i64: 1>, scalar_prefetch = 0 : i64, scratch_operands = 0 : i64, tpu.core_type = #tpu.core_type<tc>, window_params = [{transform_indices = @transform_0, window_bounds = array<i64: 8, 12>}, {pipeline_mode = #tpu.pipeline_mode<synchronous>, transform_indices = @transform_1, window_bounds = array<i64: 12, 33>}, {pipeline_mode = #tpu.pipeline_mode<synchronous>, transform_indices = @transform_2, window_bounds = array<i64: 33, 33>}, {pipeline_mode = #tpu.pipeline_mode<synchronous>, transform_indices = @transform_3, window_bounds = array<i64: 33, 13>}, {transform_indices = @transform_4, window_bounds = array<i64: 3>}, {transform_indices = @transform_5, window_bounds = array<i64: 8, 1>}]} {
    %c0 = arith.constant 0 : index
    %c0_0 = arith.constant 0 : index
    %0 = vector.load %arg1[%c0, %c0_0] : memref<8x12xf32, #tpu.memory_space<vmem>>, vector<8x12xf32>
    %c0_1 = arith.constant 0 : index
    %c0_2 = arith.constant 0 : index
    %1 = vector.load %arg2[%c0_1, %c0_2] : memref<12x33xf32, #tpu.memory_space<vmem>>, vector<12x33xf32>
    %cst = arith.constant dense<0.000000e+00> : vector<8x33xf32>
    %2 = tpu.matmul %0, %1, %cst {dimension_numbers = #tpu.dot_dimension_numbers<[1], [0], [0], [1], [0, 0, 1, 1], [], []>} : vector<8x12xf32>, vector<12x33xf32>, vector<8x33xf32> -> vector<8x33xf32>
    %cst_3 = arith.constant 0.000000e+00 : f32
    %3 = vector.broadcast %cst_3 : f32 to vector<8x33xf32>
    %4 = arith.maximumf %2, %3 : vector<8x33xf32>
    %c0_4 = arith.constant 0 : index
    %c0_5 = arith.constant 0 : index
    %5 = vector.load %arg3[%c0_4, %c0_5] : memref<33x33xf32, #tpu.memory_space<vmem>>, vector<33x33xf32>
    %cst_6 = arith.constant dense<0.000000e+00> : vector<8x33xf32>
    %6 = tpu.matmul %4, %5, %cst_6 {dimension_numbers = #tpu.dot_dimension_numbers<[1], [0], [0], [1], [0, 0, 1, 1], [], []>} : vector<8x33xf32>, vector<33x33xf32>, vector<8x33xf32> -> vector<8x33xf32>
    %cst_7 = arith.constant 0.000000e+00 : f32
    %7 = vector.broadcast %cst_7 : f32 to vector<8x33xf32>
    %8 = arith.maximumf %6, %7 : vector<8x33xf32>
    %c0_8 = arith.constant 0 : index
    %c0_9 = arith.constant 0 : index
    %9 = vector.load %arg4[%c0_8, %c0_9] : memref<33x13xf32, #tpu.memory_space<vmem>>, vector<33x13xf32>
    %cst_10 = arith.constant dense<0.000000e+00> : vector<8x13xf32>
    %10 = tpu.matmul %8, %9, %cst_10 {dimension_numbers = #tpu.dot_dimension_numbers<[1], [0], [0], [1], [0, 0, 1, 1], [], []>} : vector<8x33xf32>, vector<33x13xf32>, vector<8x13xf32> -> vector<8x13xf32>
    %11 = vector.extract_strided_slice %10 {offsets = [0, 0], sizes = [8, 7], strides = [1, 1]} : vector<8x13xf32> to vector<8x7xf32>
    %12 = math.exp %11 : vector<8x7xf32>
    %13 = vector.extract_strided_slice %12 {offsets = [0, 0], sizes = [8, 1], strides = [1, 1]} : vector<8x7xf32> to vector<8x1xf32>
    %14 = vector.extract_strided_slice %10 {offsets = [0, 7], sizes = [8, 6], strides = [1, 1]} : vector<8x13xf32> to vector<8x6xf32>
    %15 = vector.extract_strided_slice %12 {offsets = [0, 1], sizes = [8, 6], strides = [1, 1]} : vector<8x7xf32> to vector<8x6xf32>
    %16 = arith.mulf %14, %15 : vector<8x6xf32>
    %cst_11 = arith.constant dense<0.000000e+00> : vector<8xf32>
    %17 = vector.multi_reduction <add>, %16, %cst_11 [1] : vector<8x6xf32> to vector<8xf32>
    %18 = vector.shape_cast %17 : vector<8xf32> to vector<8x1xf32>
    %19 = vector.extract_strided_slice %0 {offsets = [0, 10], sizes = [8, 1], strides = [1, 1]} : vector<8x12xf32> to vector<8x1xf32>
    %20 = vector.extract_strided_slice %0 {offsets = [0, 11], sizes = [8, 1], strides = [1, 1]} : vector<8x12xf32> to vector<8x1xf32>
    %21 = arith.mulf %13, %20 : vector<8x1xf32>
    %22 = arith.addf %21, %18 : vector<8x1xf32>
    %c0_12 = arith.constant 0 : index
    %23 = memref.load %arg5[%c0_12] : memref<3xf32, #tpu.memory_space<smem>>
    %24 = vector.broadcast %23 : f32 to vector<8x1xf32>
    %25 = arith.mulf %19, %24 : vector<8x1xf32>
    %c1 = arith.constant 1 : index
    %26 = memref.load %arg5[%c1] : memref<3xf32, #tpu.memory_space<smem>>
    %27 = vector.broadcast %26 : f32 to vector<8x1xf32>
    %28 = arith.mulf %22, %27 : vector<8x1xf32>
    %29 = arith.addf %25, %28 : vector<8x1xf32>
    %c2 = arith.constant 2 : index
    %30 = memref.load %arg5[%c2] : memref<3xf32, #tpu.memory_space<smem>>
    %31 = vector.broadcast %30 : f32 to vector<8x1xf32>
    %32 = arith.addf %29, %31 : vector<8x1xf32>
    %c0_13 = arith.constant 0 : index
    %c0_14 = arith.constant 0 : index
    %33 = vector.load %arg6[%c0_13, %c0_14] : memref<8x1xf32, #tpu.memory_space<vmem>>, vector<8x1xf32>
    tpu.vector_store %arg6[%c0_13, %c0_14], %32 {strides = array<i32>} : memref<8x1xf32, #tpu.memory_space<vmem>>, vector<8x1xf32>,
    return
  }
  func.func @transform_0(%arg0: i32) -> (i32, i32) {
    %c0_i32 = arith.constant 0 : i32
    %c0_i32_0 = arith.constant 0 : i32
    return %arg0, %c0_i32 : i32, i32
  }
  func.func @transform_1(%arg0: i32) -> (i32, i32) {
    %c0_i32 = arith.constant 0 : i32
    %c0_i32_0 = arith.constant 0 : i32
    %c0_i32_1 = arith.constant 0 : i32
    return %c0_i32, %c0_i32_0 : i32, i32
  }
  func.func @transform_2(%arg0: i32) -> (i32, i32) {
    %c0_i32 = arith.constant 0 : i32
    %c0_i32_0 = arith.constant 0 : i32
    %c0_i32_1 = arith.constant 0 : i32
    return %c0_i32, %c0_i32_0 : i32, i32
  }
  func.func @transform_3(%arg0: i32) -> (i32, i32) {
    %c0_i32 = arith.constant 0 : i32
    %c0_i32_0 = arith.constant 0 : i32
    %c0_i32_1 = arith.constant 0 : i32
    return %c0_i32, %c0_i32_0 : i32, i32
  }
  func.func @transform_4(%arg0: i32) -> i32 {
    %c0_i32 = arith.constant 0 : i32
    %c0_i32_0 = arith.constant 0 : i32
    return %c0_i32 : i32
  }
  func.func @transform_5(%arg0: i32) -> (i32, i32) {
    %c0_i32 = arith.constant 0 : i32
    %c0_i32_0 = arith.constant 0 : i32
    return %arg0, %c0_i32 : i32, i32
  }
}

</mosaic_0001>

<llo_original>
// kernel: tpu_custom_call.1
$region0: #{tpu_custom_call.1}
  #allocation0 [shape = 'u32[]', space=smem, size = 0x4, offset = 0x4, fixed_abs, tag = 'smem constant byte address 0x4 - core index']
  #allocation1 [shape = 'u32[72,128]{1,0:T(1,128)}', space=vmem, size = 0x9000, scoped, tag = 'internal scratch']
  %s0 = inlined_call_operand.hbm [shape: f32[8,12], index: 0, kind: input, shape index: {}]
  %s1 = inlined_call_operand.vmem [shape: f32[12,33], index: 1, kind: input, shape index: {}]
  %s2 = inlined_call_operand.vmem [shape: f32[33,33], index: 2, kind: input, shape index: {}]
  %s3 = inlined_call_operand.vmem [shape: f32[33,13], index: 3, kind: input, shape index: {}]
  %s4 = inlined_call_operand.vmem [shape: f32[3], index: 4, kind: input, shape index: {}]
  %s5 = inlined_call_operand.vmem [shape: f32[8,1], index: 5, kind: output, shape index: {}]
  %s6 = sld [smem:[#allocation0]]
  $region38: #{tpu_custom_call.1} parent=0
    _
  %s8 = ssub.s32 1, %s6
  %s9 = scalar_select 0, %s8, %s6
  $region1: #{tpu_custom_call.1} parent=0
    #allocation2 [shape = 'u8[4096]{0}', space=vmem, size = 0x1000, scoped, tag = 'input window, operand 0, single buffered']
    #allocation3 [shape = 's32[1]{0}', space=sflag, size = 0x4, scoped, tag = 'scoped memory for tpu_custom_call.1']
    #allocation4 [shape = 's32[1]{0}', space=sflag, size = 0x4, scoped, tag = 'scoped memory for tpu_custom_call.1']
    #allocation5 [shape = 'u8[512]{0}', space=smem, size = 0x200, scoped, tag = 'input window, operand 4, single buffered']
    %10 = vsyncpa [#allocation3], 0
    %11 = vsyncpa [#allocation4], 0
    // Predicated region
    $region2: #{tpu_custom_call.1} parent=1 // pred_check
      _
    $region3: #{tpu_custom_call.1} parent=1 // pred_check_branch
      %13 = sbr.rel (0) target = $region5
    $region4: #{tpu_custom_call.1} parent=1 // pred_region
      %15 = vsyncadd [#allocation3], 0
      %s17 = sshll.u32 %s0, 4
      %s18 = int_to_ptr.hbm [resolvable:$true] %s17
      %s19 = sshll.u32 [#allocation2], 4
      %s20 = int_to_ptr.vmem [resolvable:$true] %s19
      %22 = dma.hbm_to_vmem [thread:$0]  %s18, 128, %s20, [#allocation3]
    $region5: #{tpu_custom_call.1} parent=1 // pred_fallthru
      _
    // Predicated region
    $region6: #{tpu_custom_call.1} parent=1 // pred_check
      _
    $region7: #{tpu_custom_call.1} parent=1 // pred_check_branch
      %24 = sbr.rel (0) target = $region9
    $region8: #{tpu_custom_call.1} parent=1 // pred_region
      _
    $region9: #{tpu_custom_call.1} parent=1 // pred_fallthru
      _
    // Predicated region
    $region10: #{tpu_custom_call.1} parent=1 // pred_check
      _
    $region11: #{tpu_custom_call.1} parent=1 // pred_check_branch
      %26 = sbr.rel (0) target = $region13
    $region12: #{tpu_custom_call.1} parent=1 // pred_region
      _
    $region13: #{tpu_custom_call.1} parent=1 // pred_fallthru
      _
    // Predicated region
    $region14: #{tpu_custom_call.1} parent=1 // pred_check
      _
    $region15: #{tpu_custom_call.1} parent=1 // pred_check_branch
      %28 = sbr.rel (0) target = $region17
    $region16: #{tpu_custom_call.1} parent=1 // pred_region
      _
    $region17: #{tpu_custom_call.1} parent=1 // pred_fallthru
      _
    // Predicated region
    $region18: #{tpu_custom_call.1} parent=1 // pred_check
      _
    $region19: #{tpu_custom_call.1} parent=1 // pred_check_branch
      %30 = sbr.rel (0) target = $region21
    $region20: #{tpu_custom_call.1} parent=1 // pred_region
      %32 = vsyncadd [#allocation4], 0
      %s34 = sshll.u32 %s4, 4
      %s35 = int_to_ptr.vmem [resolvable:$true] %s34
      %37 = dma.vmem_to_smem %s35, 16, [#allocation5], [#allocation4]
    $region21: #{tpu_custom_call.1} parent=1 // pred_fallthru
      _
    // Predicated region
    $region22: #{tpu_custom_call.1} parent=1 // pred_check
      _
    $region23: #{tpu_custom_call.1} parent=1 // pred_check_branch
      %39 = sbr.rel (0) target = $region25
    $region24: #{tpu_custom_call.1} parent=1 // pred_region
      %41 = dma.done [#allocation3], 128
    $region25: #{tpu_custom_call.1} parent=1 // pred_fallthru
      _
    // Predicated region
    $region26: #{tpu_custom_call.1} parent=1 // pred_check
      _
    $region27: #{tpu_custom_call.1} parent=1 // pred_check_branch
      %43 = sbr.rel (0) target = $region29
    $region28: #{tpu_custom_call.1} parent=1 // pred_region
      %45 = dma.done [#allocation4], 16
    $region29: #{tpu_custom_call.1} parent=1 // pred_fallthru
      _
    %46 = sfence
    %v47 = vld [vmem:[#allocation2] sm:$0xff]
    %v48 = vld [vmem:[%s1] sm:$0xff]
    %v49 = vld [vmem:[%s1 + $0x8] sm:$0xf]
    %vm50 = vcmask 97280
    %v52 = vsel %vm50, %v47, 0
    %vm54 = vcmask 1043456
    %v56 = vsel %vm54, %v49, 0
    %58 = vmatpush.msra.mxu0 0.0
    %59 = vmatpush.msra.mxu0 0.0
    %60 = vmatpush.msra.mxu0 0.0
    %61 = vmatpush.msra.mxu0 0.0
    %62 = vmatpush.msra.mxu0 0.0
    %63 = vmatpush.msra.mxu0 0.0
    %64 = vmatpush.msra.mxu0 0.0
    %65 = vmatpush.msra.mxu0 0.0
    %66 = vmatpush.msra.mxu0 0.0
    %67 = vmatpush.msra.mxu0 0.0
    %68 = vmatpush.msra.mxu0 0.0
    %69 = vmatpush.msra.mxu0 0.0
    %70 = vmatpush.msra.mxu0 0.0
    %71 = vmatpush.msra.mxu0 0.0
    %72 = vmatpush.msra.mxu0 %v56
    %73 = vmatpush.msra.mxu0 %v48
    %74 = vmatmul.f32.gmra.mxu0 %v52
    %v75 = vpop.f32.mrf.mxu0
    %v76 = vadd.f32 0.0, %v75
    %77 = vdwg.mxu0
    %v78 = vmax.f32 %v76, 0.0
    %v79 = vld [vmem:[%s2] sm:$0xff]
    %v80 = vld [vmem:[%s2 + $0x8] sm:$0xff]
    %v81 = vld [vmem:[%s2 + $0x10] sm:$0xff]
    %v82 = vld [vmem:[%s2 + $0x18] sm:$0xff]
    %v83 = vld [vmem:[%s2 + $0x20] sm:$0x1]
    %vm84 = vcmask 269312
    %v86 = vsel %vm84, %v78, 0
    %vm88 = vcmask 1040384
    %v90 = vsel %vm88, %v83, 0
    %92 = vmatpush.msra.mxu0 0.0
    %93 = vmatpush.msra.mxu0 0.0
    %94 = vmatpush.msra.mxu0 0.0
    %95 = vmatpush.msra.mxu0 0.0
    %96 = vmatpush.msra.mxu0 0.0
    %97 = vmatpush.msra.mxu0 0.0
    %98 = vmatpush.msra.mxu0 0.0
    %99 = vmatpush.msra.mxu0 0.0
    %100 = vmatpush.msra.mxu0 0.0
    %101 = vmatpush.msra.mxu0 0.0
    %102 = vmatpush.msra.mxu0 0.0
    %103 = vmatpush.msra.mxu0 %v90
    %104 = vmatpush.msra.mxu0 %v82
    %105 = vmatpush.msra.mxu0 %v81
    %106 = vmatpush.msra.mxu0 %v80
    %107 = vmatpush.msra.mxu0 %v79
    %108 = vmatmul.f32.gmra.mxu0 %v86
    %v109 = vpop.f32.mrf.mxu0
    %v110 = vadd.f32 0.0, %v109
    %111 = vdwg.mxu0
    %v112 = vmax.f32 %v110, 0.0
    %v113 = vld [vmem:[%s3] sm:$0xff]
    %v114 = vld [vmem:[%s3 + $0x8] sm:$0xff]
    %v115 = vld [vmem:[%s3 + $0x10] sm:$0xff]
    %v116 = vld [vmem:[%s3 + $0x18] sm:$0xff]
    %v117 = vld [vmem:[%s3 + $0x20] sm:$0x1]
    %v119 = vsel %vm84, %v112, 0
    %v122 = vsel %vm88, %v117, 0
    %124 = vmatpush.msra.mxu0 0.0
    %125 = vmatpush.msra.mxu0 0.0
    %126 = vmatpush.msra.mxu0 0.0
    %127 = vmatpush.msra.mxu0 0.0
    %128 = vmatpush.msra.mxu0 0.0
    %129 = vmatpush.msra.mxu0 0.0
    %130 = vmatpush.msra.mxu0 0.0
    %131 = vmatpush.msra.mxu0 0.0
    %132 = vmatpush.msra.mxu0 0.0
    %133 = vmatpush.msra.mxu0 0.0
    %134 = vmatpush.msra.mxu0 0.0
    %135 = vmatpush.msra.mxu0 %v122
    %136 = vmatpush.msra.mxu0 %v116
    %137 = vmatpush.msra.mxu0 %v115
    %138 = vmatpush.msra.mxu0 %v114
    %139 = vmatpush.msra.mxu0 %v113
    %140 = vmatmul.f32.gmra.mxu0 %v119
    %v141 = vpop.f32.mrf.mxu0
    %v142 = vadd.f32 0.0, %v141
    %143 = vdwg.mxu0
    %v144 = vmul.f32 %v142, 1.442695
    %v145 = vpow.pop %v144
    %147 = vrot.lane.b32.xlu0 %v145, 6
    %v148 = vpop.permute.xlu0 %147
    %v150 = vmul.f32 %v142, %v148
    %152 = vrot.lane.b32.xlu0 %v150, 121
    %v153 = vpop.permute.xlu0 %152
    %vm155 = vcmask 48128
    %v156 = vsel %vm155, %v153, 0.0
    %157 = vadd.xlane.f32.xlu0 %v156
    %v158 = vpop.xlane.xlu0 %157
    %159 = vrot.lane.b32.xlu0 %v47, 117
    %v160 = vpop.permute.xlu0 %159
    %v162 = vmul.f32 %v145, %v160
    %v163 = vadd.f32 %v162, %v158
    %s164 = sld [smem:[#allocation5]]
    %v165 = vstv %s164
    %v166 = vmul.f32 %v47, %v165
    %s167 = sld [smem:[#allocation5 + $0x1]]
    %v168 = vstv %s167
    %v169 = vmul.f32 %v163, %v168
    %171 = vrot.lane.b32.xlu0 %v169, 10
    %v172 = vpop.permute.xlu0 %171
    %v174 = vadd.f32 %v166, %v172
    %s175 = sld [smem:[#allocation5 + $0x2]]
    %v176 = vstv %s175
    %v177 = vadd.f32 %v174, %v176
    %179 = vrot.lane.b32.xlu0 %v177, 118
    %v180 = vpop.permute.xlu0 %179
    %vm182 = vcmask 7168
    %183 = vst.msk [vmem:[%s5] sm:$0xff] %vm182, %v180
    // Predicated region
    $region30: #{tpu_custom_call.1} parent=1 // pred_check
      _
    $region31: #{tpu_custom_call.1} parent=1 // pred_check_branch
      %185 = sbr.rel (0) target = $region33
    $region32: #{tpu_custom_call.1} parent=1 // pred_region
      _
    $region33: #{tpu_custom_call.1} parent=1 // pred_fallthru
      _
    // Predicated region
    $region34: #{tpu_custom_call.1} parent=1 // pred_check
      _
    $region35: #{tpu_custom_call.1} parent=1 // pred_check_branch
      %187 = sbr.rel (0) target = $region37
    $region36: #{tpu_custom_call.1} parent=1 // pred_region
      _
    $region37: #{tpu_custom_call.1} parent=1 // pred_fallthru
      _
    %188 = vsyncpa [#allocation3], 1
    %189 = vsyncpa [#allocation4], 1

</llo_original>
